<compile_context>
chip_gen: v7x
topology: tpu7x:2x2x1
jax: 0.10.0
libtpu: 0.0.40
codegen_flags: <defaults>
</compile_context>

<pallas_src>
import jax
import jax.numpy as jnp
from jax import lax
from jax.experimental import pallas as pl
from jax.experimental.pallas import tpu as pltpu

K = 7   # conv kernel size
P = 3   # padding


def _spatial_attention_kernel(x_ref, a_ref, b_ref, o_ref):
    # x_ref: (TB, C, HW) VMEM block (native dtype)
    # a_ref: (2, HW, HW) f32 VMEM (folded conv operator, grid-invariant)
    # b_ref: (1,) f32 SMEM (conv bias)
    # o_ref: (TB, C, HW) VMEM block
    x = x_ref[...]                                     # (TB, C, HW)
    xf = x.astype(jnp.float32)

    maxp = jnp.max(xf, axis=1)                         # (TB, HW)  torch.max(x, 1)
    avgp = jnp.mean(xf, axis=1)                        # (TB, HW)  torch.mean(x, 1)

    # 7x7 "same" conv on [max, avg] expressed as two lane-dense MXU matmuls.
    conv = (jnp.dot(maxp, a_ref[0], preferred_element_type=jnp.float32)
            + jnp.dot(avgp, a_ref[1], preferred_element_type=jnp.float32))

    ms = jax.nn.sigmoid(conv + b_ref[0])               # (TB, HW)
    o_ref[...] = (x * ms[:, None, :].astype(x.dtype)).astype(o_ref.dtype)


def _build_conv_operator(w, H, W):
    """Fold the 7x7 zero-padded conv into A[c, iy*W+ix, oy*W+ox]."""
    wk = w.reshape(2, K, K).astype(jnp.float32)
    dy = jnp.arange(H)[:, None] - jnp.arange(H)[None, :] + P     # (H_in, H_out)
    dx = jnp.arange(W)[:, None] - jnp.arange(W)[None, :] + P     # (W_in, W_out)
    vy = (dy >= 0) & (dy < K)
    vx = (dx >= 0) & (dx < K)
    dyc = jnp.clip(dy, 0, K - 1)
    dxc = jnp.clip(dx, 0, K - 1)
    # a[c, iy, ix, oy, ox] = w[c, iy-oy+P, ix-ox+P]
    a = wk[:, dyc[:, None, :, None], dxc[None, :, None, :]]      # (2, H, W, H, W)
    mask = (vy[:, None, :, None] & vx[None, :, None, :]).astype(jnp.float32)
    return (a * mask).reshape(2, H * W, H * W)


@jax.jit
def spatial_attention(x, w, b):
    """x: (B, C, H, W); w: (1, 2, 7, 7) conv weight; b: (1,) conv bias."""
    B, C, H, W = x.shape
    HW = H * W
    x2 = x.reshape(B, C, HW)                           # lane-dense layout

    A = _build_conv_operator(w, H, W)                  # (2, HW, HW) f32, hoisted
    b_flat = b.reshape(-1).astype(jnp.float32)

    # Batch elements per grid step: largest divisor of B within a ~4 MiB
    # per-block budget (keeps double-buffered in+out well inside VMEM on v7x).
    bytes_per_b = C * HW * x2.dtype.itemsize
    tb = max(1, min(B, (4 * 1024 * 1024) // max(bytes_per_b, 1)))
    while B % tb != 0:
        tb -= 1
    nb = B // tb

    out2 = pl.pallas_call(
        _spatial_attention_kernel,
        out_shape=jax.ShapeDtypeStruct((B, C, HW), x.dtype),
        grid_spec=pltpu.PrefetchScalarGridSpec(
            num_scalar_prefetch=0,
            grid=(nb,),
            in_specs=[
                pl.BlockSpec((tb, C, HW), lambda i: (i, 0, 0)),
                pl.BlockSpec((2, HW, HW), lambda i: (0, 0, 0)),   # resident
                pl.BlockSpec(memory_space=pltpu.MemorySpace.SMEM),
            ],
            out_specs=pl.BlockSpec((tb, C, HW), lambda i: (i, 0, 0)),
        ),
        compiler_params=pltpu.CompilerParams(
            dimension_semantics=("parallel",),
            vmem_limit_bytes=64 * 1024 * 1024,
        ),
    )(x2, A, b_flat)

    return out2.reshape(B, C, H, W)


def reference(x, w, b):
    """Pure-JAX reference matching the PyTorch forward."""
    maxp = jnp.max(x, axis=1, keepdims=True)
    avgp = jnp.mean(x, axis=1, keepdims=True)
    cat = jnp.concatenate([maxp, avgp], axis=1)
    out = lax.conv_general_dilated(
        cat, w, window_strides=(1, 1), padding=((P, P), (P, P)),
        dimension_numbers=("NCHW", "OIHW", "NCHW"))
    ms = jax.nn.sigmoid(out + b.reshape(1, 1, 1, 1))
    return ms * x


if __name__ == "__main__":
    key = jax.random.PRNGKey(0)
    k_x, k_w, k_b = jax.random.split(key, 3)

    B, C, H, W = 2, 4, 16, 16
    x = jax.random.normal(k_x, (B, C, H, W), dtype=jnp.float32)

    # Deterministic conv params (PyTorch-default-style uniform init).
    fan_in = 2 * K * K
    bound = 1.0 / (fan_in ** 0.5)
    w = jax.random.uniform(k_w, (1, 2, K, K), jnp.float32, -bound, bound)
    b = jax.random.uniform(k_b, (1,), jnp.float32, -bound, bound)

    out = spatial_attention(x, w, b)
    out = jax.block_until_ready(out)

    ref = reference(x, w, b)
    assert out.shape == x.shape and out.dtype == x.dtype
    assert jnp.allclose(out, ref, atol=1e-4, rtol=1e-4), (
        f"max abs err = {jnp.max(jnp.abs(out - ref))}")

    print("KERNEL_OK")
</pallas_src>

<mosaic_0001>
module attributes {stable_mosaic.version = 11 : i64} {
  func.func @_spatial_attention_kernel(%arg0: i32, %arg1: memref<2x4x256xf32, #tpu.memory_space<vmem>>, %arg2: memref<2x256x256xf32, #tpu.memory_space<vmem>>, %arg3: memref<1xf32, #tpu.memory_space<smem>>, %arg4: memref<2x4x256xf32, #tpu.memory_space<vmem>>) attributes {dimension_semantics = [#tpu.dimension_semantics<parallel>], iteration_bounds = array<i64: 1>, scalar_prefetch = 0 : i64, scratch_operands = 0 : i64, tpu.core_type = #tpu.core_type<tc>, window_params = [{transform_indices = @transform_0, window_bounds = array<i64: 2, 4, 256>}, {pipeline_mode = #tpu.pipeline_mode<synchronous>, transform_indices = @transform_1, window_bounds = array<i64: 2, 256, 256>}, {transform_indices = @transform_2, window_bounds = array<i64: 1>}, {transform_indices = @transform_3, window_bounds = array<i64: 2, 4, 256>}]} {
    %c0 = arith.constant 0 : index
    %c0_0 = arith.constant 0 : index
    %c0_1 = arith.constant 0 : index
    %0 = vector.load %arg1[%c0, %c0_0, %c0_1] : memref<2x4x256xf32, #tpu.memory_space<vmem>>, vector<2x4x256xf32>
    %cst = arith.constant dense<0xFF800000> : vector<2x256xf32>
    %1 = vector.multi_reduction <maximumf>, %0, %cst [1] : vector<2x4x256xf32> to vector<2x256xf32>
    %cst_2 = arith.constant dense<0.000000e+00> : vector<2x256xf32>
    %2 = vector.multi_reduction <add>, %0, %cst_2 [1] : vector<2x4x256xf32> to vector<2x256xf32>
    %cst_3 = arith.constant 4.000000e+00 : f32
    %3 = vector.broadcast %cst_3 : f32 to vector<2x256xf32>
    %4 = arith.divf %2, %3 : vector<2x256xf32>
    %c0_4 = arith.constant 0 : index
    %c0_5 = arith.constant 0 : index
    %c0_6 = arith.constant 0 : index
    %5 = vector.load %arg2[%c0_4, %c0_5, %c0_6] : memref<2x256x256xf32, #tpu.memory_space<vmem>>, vector<1x256x256xf32>
    %6 = vector.shape_cast %5 : vector<1x256x256xf32> to vector<256x256xf32>
    %cst_7 = arith.constant dense<0.000000e+00> : vector<2x256xf32>
    %7 = tpu.matmul %1, %6, %cst_7 {dimension_numbers = #tpu.dot_dimension_numbers<[1], [0], [0], [1], [0, 0, 1, 1], [], []>} : vector<2x256xf32>, vector<256x256xf32>, vector<2x256xf32> -> vector<2x256xf32>
    %c1 = arith.constant 1 : index
    %c0_8 = arith.constant 0 : index
    %c0_9 = arith.constant 0 : index
    %8 = vector.load %arg2[%c1, %c0_8, %c0_9] : memref<2x256x256xf32, #tpu.memory_space<vmem>>, vector<1x256x256xf32>
    %9 = vector.shape_cast %8 : vector<1x256x256xf32> to vector<256x256xf32>
    %cst_10 = arith.constant dense<0.000000e+00> : vector<2x256xf32>
    %10 = tpu.matmul %4, %9, %cst_10 {dimension_numbers = #tpu.dot_dimension_numbers<[1], [0], [0], [1], [0, 0, 1, 1], [], []>} : vector<2x256xf32>, vector<256x256xf32>, vector<2x256xf32> -> vector<2x256xf32>
    %11 = arith.addf %7, %10 : vector<2x256xf32>
    %c0_11 = arith.constant 0 : index
    %12 = memref.load %arg3[%c0_11] : memref<1xf32, #tpu.memory_space<smem>>
    %13 = vector.broadcast %12 : f32 to vector<2x256xf32>
    %14 = arith.addf %11, %13 : vector<2x256xf32>
    %15 = arith.negf %14 : vector<2x256xf32>
    %16 = math.exp %15 : vector<2x256xf32>
    %cst_12 = arith.constant 1.000000e+00 : f32
    %17 = vector.broadcast %cst_12 : f32 to vector<2x256xf32>
    %18 = arith.addf %17, %16 : vector<2x256xf32>
    %19 = arith.divf %17, %18 : vector<2x256xf32>
    %20 = vector.shape_cast %19 : vector<2x256xf32> to vector<2x1x256xf32>
    %21 = vector.broadcast %20 : vector<2x1x256xf32> to vector<2x4x256xf32>
    %22 = arith.mulf %0, %21 : vector<2x4x256xf32>
    %c0_13 = arith.constant 0 : index
    %c0_14 = arith.constant 0 : index
    %c0_15 = arith.constant 0 : index
    %23 = vector.load %arg4[%c0_13, %c0_14, %c0_15] : memref<2x4x256xf32, #tpu.memory_space<vmem>>, vector<2x4x256xf32>
    tpu.vector_store %arg4[%c0_13, %c0_14, %c0_15], %22 {strides = array<i32>} : memref<2x4x256xf32, #tpu.memory_space<vmem>>, vector<2x4x256xf32>,
    return
  }
  func.func @transform_0(%arg0: i32) -> (i32, i32, i32) {
    %c0_i32 = arith.constant 0 : i32
    %c0_i32_0 = arith.constant 0 : i32
    %c0_i32_1 = arith.constant 0 : i32
    return %arg0, %c0_i32, %c0_i32_0 : i32, i32, i32
  }
  func.func @transform_1(%arg0: i32) -> (i32, i32, i32) {
    %c0_i32 = arith.constant 0 : i32
    %c0_i32_0 = arith.constant 0 : i32
    %c0_i32_1 = arith.constant 0 : i32
    %c0_i32_2 = arith.constant 0 : i32
    return %c0_i32, %c0_i32_0, %c0_i32_1 : i32, i32, i32
  }
  func.func @transform_2(%arg0: i32) -> i32 {
    %c0_i32 = arith.constant 0 : i32
    %c0_i32_0 = arith.constant 0 : i32
    return %c0_i32 : i32
  }
  func.func @transform_3(%arg0: i32) -> (i32, i32, i32) {
    %c0_i32 = arith.constant 0 : i32
    %c0_i32_0 = arith.constant 0 : i32
    %c0_i32_1 = arith.constant 0 : i32
    return %arg0, %c0_i32, %c0_i32_0 : i32, i32, i32
  }
}

</mosaic_0001>

<llo_original>
// kernel: spatial_attention.1
$region0: #{spatial_attention.1}
  #allocation0 [shape = 'u32[]', space=smem, size = 0x4, offset = 0x4, fixed_abs, tag = 'smem constant byte address 0x4 - core index']
  #allocation1 [shape = 'u32[144,128]{1,0:T(1,128)}', space=vmem, size = 0x12000, scoped, tag = 'internal scratch']
  #allocation2 [shape = 'f32[1]{0:T(128)S(6)}', space=smem, size = 0x200, scoped, tag = 'scoped memory for spatial_attention.1']
  %s0 = inlined_call_operand.hbm [shape: f32[2,4,256], index: 0, kind: input, shape index: {}]
  %s1 = inlined_call_operand.hbm [shape: f32[2,256,256], index: 1, kind: input, shape index: {}]
  %s2 = inlined_call_operand.<no memory space> [shape: f32[1], index: 2, kind: input, shape index: {}]
  %s3 = inlined_call_operand.hbm [shape: f32[2,4,256], index: 3, kind: output, shape index: {}]
  %s4 = sld [smem:[#allocation0]]
  $region30: #{spatial_attention.1} parent=0
    _
  %s6 = ssub.s32 1, %s4
  %s7 = scalar_select 0, %s6, %s4
  %8 = sst [smem:[#allocation2]] %s2
  $region1: #{spatial_attention.1} parent=0
    #allocation3 [shape = 'u8[8192]{0}', space=vmem, size = 0x2000, scoped, tag = 'input window, operand 0, single buffered']
    #allocation4 [shape = 's32[1]{0}', space=sflag, size = 0x4, scoped, tag = 'scoped memory for spatial_attention.1']
    #allocation5 [shape = 's32[1]{0}', space=sflag, size = 0x4, scoped, tag = 'scoped memory for spatial_attention.1']
    #allocation6 [shape = 'u8[524288]{0}', space=vmem, size = 0x80000, scoped, tag = 'input window, operand 1, single buffered']
    #allocation7 [shape = 's32[1]{0}', space=sflag, size = 0x4, scoped, tag = 'scoped memory for spatial_attention.1']
    #allocation8 [shape = 'u8[8192]{0}', space=vmem, size = 0x2000, scoped, tag = 'output window, operand 0, single buffered']
    %9 = vsyncpa [#allocation4], 0
    %10 = vsyncpa [#allocation7], 0
    %11 = vsyncpa [#allocation5], 0
    // Predicated region
    $region2: #{spatial_attention.1} parent=1 // pred_check
      _
    $region3: #{spatial_attention.1} parent=1 // pred_check_branch
      %13 = sbr.rel (0) target = $region5
    $region4: #{spatial_attention.1} parent=1 // pred_region
      %s15 = ssub.s32 256, 256
      %16 = vsyncadd [#allocation4], %s15
      %s17 = sshll.u32 [#allocation3], 4
      %s18 = int_to_ptr.vmem [resolvable:$true] %s17
      %23 = dma.hbm_to_vmem [thread:$0]  %s0, 256, %s18, [#allocation4], 128, 128, 8
    $region5: #{spatial_attention.1} parent=1 // pred_fallthru
      _
    // Predicated region
    $region6: #{spatial_attention.1} parent=1 // pred_check
      _
    $region7: #{spatial_attention.1} parent=1 // pred_check_branch
      %25 = sbr.rel (0) target = $region9
    $region8: #{spatial_attention.1} parent=1 // pred_region
      %s27 = ssub.s32 16384, 16384
      %28 = vsyncadd [#allocation7], %s27
      %s29 = sshll.u32 [#allocation6], 4
      %s30 = int_to_ptr.vmem [resolvable:$true] %s29
      %35 = dma.hbm_to_vmem [thread:$0]  %s1, 16384, %s30, [#allocation7], 256, 256, 16
    $region9: #{spatial_attention.1} parent=1 // pred_fallthru
      _
    // Predicated region
    $region10: #{spatial_attention.1} parent=1 // pred_check
      _
    $region11: #{spatial_attention.1} parent=1 // pred_check_branch
      %37 = sbr.rel (0) target = $region13
    $region12: #{spatial_attention.1} parent=1 // pred_region
      _
    $region13: #{spatial_attention.1} parent=1 // pred_fallthru
      _
    // Predicated region
    $region14: #{spatial_attention.1} parent=1 // pred_check
      _
    $region15: #{spatial_attention.1} parent=1 // pred_check_branch
      %39 = sbr.rel (0) target = $region17
    $region16: #{spatial_attention.1} parent=1 // pred_region
      %40 = dma.done [#allocation4], 256
    $region17: #{spatial_attention.1} parent=1 // pred_fallthru
      _
    // Predicated region
    $region18: #{spatial_attention.1} parent=1 // pred_check
      _
    $region19: #{spatial_attention.1} parent=1 // pred_check_branch
      %42 = sbr.rel (0) target = $region21
    $region20: #{spatial_attention.1} parent=1 // pred_region
      %43 = dma.done [#allocation7], 16384
    $region21: #{spatial_attention.1} parent=1 // pred_fallthru
      _
    %v44 = vld [vmem:[#allocation3] sm:$0xff]
    %v45 = vld [vmem:[#allocation3 + $0x8] sm:$0xff]
    %v48 = vcombine.high %v44, %v44
    %v49 = vcombine.high %v45, %v45
    %vm52 = vcmask 1043456
    %v53 = vsel %vm52, %v44, -inf
    %v54 = vrot.slane %v53, 4
    %v55 = vmax.f32 %v53, %v54
    %v56 = vrot.slane %v55, 2
    %v57 = vmax.f32 %v55, %v56
    %v58 = vrot.slane %v57, 1
    %v59 = vmax.f32 %v57, %v58
    %v60 = vsel %vm52, %v48, -inf
    %v61 = vrot.slane %v60, 4
    %v62 = vmax.f32 %v60, %v61
    %v63 = vrot.slane %v62, 2
    %v64 = vmax.f32 %v62, %v63
    %v65 = vrot.slane %v64, 1
    %v66 = vmax.f32 %v64, %v65
    %v67 = vsel %vm52, %v45, -inf
    %v68 = vrot.slane %v67, 4
    %v69 = vmax.f32 %v67, %v68
    %v70 = vrot.slane %v69, 2
    %v71 = vmax.f32 %v69, %v70
    %v72 = vrot.slane %v71, 1
    %v73 = vmax.f32 %v71, %v72
    %v74 = vsel %vm52, %v49, -inf
    %v75 = vrot.slane %v74, 4
    %v76 = vmax.f32 %v74, %v75
    %v77 = vrot.slane %v76, 2
    %v78 = vmax.f32 %v76, %v77
    %v79 = vrot.slane %v78, 1
    %v80 = vmax.f32 %v78, %v79
    %v81 = vsel %vm52, %v44, 0.0
    %v82 = vrot.slane %v81, 4
    %v83 = vadd.f32 %v81, %v82
    %v84 = vrot.slane %v83, 2
    %v85 = vadd.f32 %v83, %v84
    %v86 = vrot.slane %v85, 1
    %v87 = vadd.f32 %v85, %v86
    %v88 = vsel %vm52, %v48, 0.0
    %v89 = vrot.slane %v88, 4
    %v90 = vadd.f32 %v88, %v89
    %v91 = vrot.slane %v90, 2
    %v92 = vadd.f32 %v90, %v91
    %v93 = vrot.slane %v92, 1
    %v94 = vadd.f32 %v92, %v93
    %v95 = vsel %vm52, %v45, 0.0
    %v96 = vrot.slane %v95, 4
    %v97 = vadd.f32 %v95, %v96
    %v98 = vrot.slane %v97, 2
    %v99 = vadd.f32 %v97, %v98
    %v100 = vrot.slane %v99, 1
    %v101 = vadd.f32 %v99, %v100
    %v102 = vsel %vm52, %v49, 0.0
    %v103 = vrot.slane %v102, 4
    %v104 = vadd.f32 %v102, %v103
    %v105 = vrot.slane %v104, 2
    %v106 = vadd.f32 %v104, %v105
    %v107 = vrot.slane %v106, 1
    %v108 = vadd.f32 %v106, %v107
    %v109 = vrcp.pop 4.0
    %v110 = vmul.f32 %v87, %v109
    %v111 = vmul.f32 %v94, %v109
    %v112 = vmul.f32 %v101, %v109
    %v113 = vmul.f32 %v108, %v109
    %v114 = vld [vmem:[#allocation6] sm:$0xff]
    %v115 = vld [vmem:[#allocation6 + $0x8] sm:$0xff]
    %v116 = vld [vmem:[#allocation6 + $0x10] sm:$0xff]
    %v117 = vld [vmem:[#allocation6 + $0x18] sm:$0xff]
    %v118 = vld [vmem:[#allocation6 + $0x20] sm:$0xff]
    %v119 = vld [vmem:[#allocation6 + $0x28] sm:$0xff]
    %v120 = vld [vmem:[#allocation6 + $0x30] sm:$0xff]
    %v121 = vld [vmem:[#allocation6 + $0x38] sm:$0xff]
    %v122 = vld [vmem:[#allocation6 + $0x40] sm:$0xff]
    %v123 = vld [vmem:[#allocation6 + $0x48] sm:$0xff]
    %v124 = vld [vmem:[#allocation6 + $0x50] sm:$0xff]
    %v125 = vld [vmem:[#allocation6 + $0x58] sm:$0xff]
    %v126 = vld [vmem:[#allocation6 + $0x60] sm:$0xff]
    %v127 = vld [vmem:[#allocation6 + $0x68] sm:$0xff]
    %v128 = vld [vmem:[#allocation6 + $0x70] sm:$0xff]
    %v129 = vld [vmem:[#allocation6 + $0x78] sm:$0xff]
    %v130 = vld [vmem:[#allocation6 + $0x80] sm:$0xff]
    %v131 = vld [vmem:[#allocation6 + $0x88] sm:$0xff]
    %v132 = vld [vmem:[#allocation6 + $0x90] sm:$0xff]
    %v133 = vld [vmem:[#allocation6 + $0x98] sm:$0xff]
    %v134 = vld [vmem:[#allocation6 + $0xa0] sm:$0xff]
    %v135 = vld [vmem:[#allocation6 + $0xa8] sm:$0xff]
    %v136 = vld [vmem:[#allocation6 + $0xb0] sm:$0xff]
    %v137 = vld [vmem:[#allocation6 + $0xb8] sm:$0xff]
    %v138 = vld [vmem:[#allocation6 + $0xc0] sm:$0xff]
    %v139 = vld [vmem:[#allocation6 + $0xc8] sm:$0xff]
    %v140 = vld [vmem:[#allocation6 + $0xd0] sm:$0xff]
    %v141 = vld [vmem:[#allocation6 + $0xd8] sm:$0xff]
    %v142 = vld [vmem:[#allocation6 + $0xe0] sm:$0xff]
    %v143 = vld [vmem:[#allocation6 + $0xe8] sm:$0xff]
    %v144 = vld [vmem:[#allocation6 + $0xf0] sm:$0xff]
    %v145 = vld [vmem:[#allocation6 + $0xf8] sm:$0xff]
    %v146 = vld [vmem:[#allocation6 + $0x100] sm:$0xff]
    %v147 = vld [vmem:[#allocation6 + $0x108] sm:$0xff]
    %v148 = vld [vmem:[#allocation6 + $0x110] sm:$0xff]
    %v149 = vld [vmem:[#allocation6 + $0x118] sm:$0xff]
    %v150 = vld [vmem:[#allocation6 + $0x120] sm:$0xff]
    %v151 = vld [vmem:[#allocation6 + $0x128] sm:$0xff]
    %v152 = vld [vmem:[#allocation6 + $0x130] sm:$0xff]
    %v153 = vld [vmem:[#allocation6 + $0x138] sm:$0xff]
    %v154 = vld [vmem:[#allocation6 + $0x140] sm:$0xff]
    %v155 = vld [vmem:[#allocation6 + $0x148] sm:$0xff]
    %v156 = vld [vmem:[#allocation6 + $0x150] sm:$0xff]
    %v157 = vld [vmem:[#allocation6 + $0x158] sm:$0xff]
    %v158 = vld [vmem:[#allocation6 + $0x160] sm:$0xff]
    %v159 = vld [vmem:[#allocation6 + $0x168] sm:$0xff]
    %v160 = vld [vmem:[#allocation6 + $0x170] sm:$0xff]
    %v161 = vld [vmem:[#allocation6 + $0x178] sm:$0xff]
    %v162 = vld [vmem:[#allocation6 + $0x180] sm:$0xff]
    %v163 = vld [vmem:[#allocation6 + $0x188] sm:$0xff]
    %v164 = vld [vmem:[#allocation6 + $0x190] sm:$0xff]
    %v165 = vld [vmem:[#allocation6 + $0x198] sm:$0xff]
    %v166 = vld [vmem:[#allocation6 + $0x1a0] sm:$0xff]
    %v167 = vld [vmem:[#allocation6 + $0x1a8] sm:$0xff]
    %v168 = vld [vmem:[#allocation6 + $0x1b0] sm:$0xff]
    %v169 = vld [vmem:[#allocation6 + $0x1b8] sm:$0xff]
    %v170 = vld [vmem:[#allocation6 + $0x1c0] sm:$0xff]
    %v171 = vld [vmem:[#allocation6 + $0x1c8] sm:$0xff]
    %v172 = vld [vmem:[#allocation6 + $0x1d0] sm:$0xff]
    %v173 = vld [vmem:[#allocation6 + $0x1d8] sm:$0xff]
    %v174 = vld [vmem:[#allocation6 + $0x1e0] sm:$0xff]
    %v175 = vld [vmem:[#allocation6 + $0x1e8] sm:$0xff]
    %v176 = vld [vmem:[#allocation6 + $0x1f0] sm:$0xff]
    %v177 = vld [vmem:[#allocation6 + $0x1f8] sm:$0xff]
    %s178 = scalar_lea.vmem [#allocation6], 512
    %v179 = vld [vmem:[%s178] sm:$0xff]
    %v180 = vld [vmem:[%s178 + $0x8] sm:$0xff]
    %v181 = vld [vmem:[%s178 + $0x10] sm:$0xff]
    %v182 = vld [vmem:[%s178 + $0x18] sm:$0xff]
    %v183 = vld [vmem:[%s178 + $0x20] sm:$0xff]
    %v184 = vld [vmem:[%s178 + $0x28] sm:$0xff]
    %v185 = vld [vmem:[%s178 + $0x30] sm:$0xff]
    %v186 = vld [vmem:[%s178 + $0x38] sm:$0xff]
    %v187 = vld [vmem:[%s178 + $0x40] sm:$0xff]
    %v188 = vld [vmem:[%s178 + $0x48] sm:$0xff]
    %v189 = vld [vmem:[%s178 + $0x50] sm:$0xff]
    %v190 = vld [vmem:[%s178 + $0x58] sm:$0xff]
    %v191 = vld [vmem:[%s178 + $0x60] sm:$0xff]
    %v192 = vld [vmem:[%s178 + $0x68] sm:$0xff]
    %v193 = vld [vmem:[%s178 + $0x70] sm:$0xff]
    %v194 = vld [vmem:[%s178 + $0x78] sm:$0xff]
    %v195 = vld [vmem:[%s178 + $0x80] sm:$0xff]
    %v196 = vld [vmem:[%s178 + $0x88] sm:$0xff]
    %v197 = vld [vmem:[%s178 + $0x90] sm:$0xff]
    %v198 = vld [vmem:[%s178 + $0x98] sm:$0xff]
    %v199 = vld [vmem:[%s178 + $0xa0] sm:$0xff]
    %v200 = vld [vmem:[%s178 + $0xa8] sm:$0xff]
    %v201 = vld [vmem:[%s178 + $0xb0] sm:$0xff]
    %v202 = vld [vmem:[%s178 + $0xb8] sm:$0xff]
    %v203 = vld [vmem:[%s178 + $0xc0] sm:$0xff]
    %v204 = vld [vmem:[%s178 + $0xc8] sm:$0xff]
    %v205 = vld [vmem:[%s178 + $0xd0] sm:$0xff]
    %v206 = vld [vmem:[%s178 + $0xd8] sm:$0xff]
    %v207 = vld [vmem:[%s178 + $0xe0] sm:$0xff]
    %v208 = vld [vmem:[%s178 + $0xe8] sm:$0xff]
    %v209 = vld [vmem:[%s178 + $0xf0] sm:$0xff]
    %v210 = vld [vmem:[%s178 + $0xf8] sm:$0xff]
    %v211 = vld [vmem:[%s178 + $0x100] sm:$0xff]
    %v212 = vld [vmem:[%s178 + $0x108] sm:$0xff]
    %v213 = vld [vmem:[%s178 + $0x110] sm:$0xff]
    %v214 = vld [vmem:[%s178 + $0x118] sm:$0xff]
    %v215 = vld [vmem:[%s178 + $0x120] sm:$0xff]
    %v216 = vld [vmem:[%s178 + $0x128] sm:$0xff]
    %v217 = vld [vmem:[%s178 + $0x130] sm:$0xff]
    %v218 = vld [vmem:[%s178 + $0x138] sm:$0xff]
    %v219 = vld [vmem:[%s178 + $0x140] sm:$0xff]
    %v220 = vld [vmem:[%s178 + $0x148] sm:$0xff]
    %v221 = vld [vmem:[%s178 + $0x150] sm:$0xff]
    %v222 = vld [vmem:[%s178 + $0x158] sm:$0xff]
    %v223 = vld [vmem:[%s178 + $0x160] sm:$0xff]
    %v224 = vld [vmem:[%s178 + $0x168] sm:$0xff]
    %v225 = vld [vmem:[%s178 + $0x170] sm:$0xff]
    %v226 = vld [vmem:[%s178 + $0x178] sm:$0xff]
    %v227 = vld [vmem:[%s178 + $0x180] sm:$0xff]
    %v228 = vld [vmem:[%s178 + $0x188] sm:$0xff]
    %v229 = vld [vmem:[%s178 + $0x190] sm:$0xff]
    %v230 = vld [vmem:[%s178 + $0x198] sm:$0xff]
    %v231 = vld [vmem:[%s178 + $0x1a0] sm:$0xff]
    %v232 = vld [vmem:[%s178 + $0x1a8] sm:$0xff]
    %v233 = vld [vmem:[%s178 + $0x1b0] sm:$0xff]
    %v234 = vld [vmem:[%s178 + $0x1b8] sm:$0xff]
    %v235 = vld [vmem:[%s178 + $0x1c0] sm:$0xff]
    %v236 = vld [vmem:[%s178 + $0x1c8] sm:$0xff]
    %v237 = vld [vmem:[%s178 + $0x1d0] sm:$0xff]
    %v238 = vld [vmem:[%s178 + $0x1d8] sm:$0xff]
    %v239 = vld [vmem:[%s178 + $0x1e0] sm:$0xff]
    %v240 = vld [vmem:[%s178 + $0x1e8] sm:$0xff]
    %v241 = vld [vmem:[%s178 + $0x1f0] sm:$0xff]
    %v242 = vld [vmem:[%s178 + $0x1f8] sm:$0xff]
    %vm247 = vcmask 1041409
    %v248 = vsel %vm247, %v112, %v110
    %v249 = vsel %vm247, %v113, %v111
    %252 = vmatprep.subr.mxu0 %v180
    %253 = vmatpush1.msra.mxu0 %v179
    %254 = vmatprep.subr.mxu0 %v182
    %255 = vmatpush1.msra.mxu0 %v181
    %256 = vmatprep.subr.mxu0 %v184
    %257 = vmatpush1.msra.mxu0 %v183
    %258 = vmatprep.subr.mxu0 %v186
    %259 = vmatpush1.msra.mxu0 %v185
    %260 = vmatprep.subr.mxu0 %v188
    %261 = vmatpush1.msra.mxu0 %v187
    %262 = vmatprep.subr.mxu0 %v190
    %263 = vmatpush1.msra.mxu0 %v189
    %264 = vmatprep.subr.mxu0 %v192
    %265 = vmatpush1.msra.mxu0 %v191
    %266 = vmatprep.subr.mxu0 %v194
    %267 = vmatpush1.msra.mxu0 %v193
    %268 = vmatprep.subr.mxu0 %v196
    %269 = vmatpush1.msra.mxu0 %v195
    %270 = vmatprep.subr.mxu0 %v198
    %271 = vmatpush1.msra.mxu0 %v197
    %272 = vmatprep.subr.mxu0 %v200
    %273 = vmatpush1.msra.mxu0 %v199
    %274 = vmatprep.subr.mxu0 %v202
    %275 = vmatpush1.msra.mxu0 %v201
    %276 = vmatprep.subr.mxu0 %v204
    %277 = vmatpush1.msra.mxu0 %v203
    %278 = vmatprep.subr.mxu0 %v206
    %279 = vmatpush1.msra.mxu0 %v205
    %280 = vmatprep.subr.mxu0 %v208
    %281 = vmatpush1.msra.mxu0 %v207
    %282 = vmatprep.subr.mxu0 %v210
    %283 = vmatpush1.msra.mxu0 %v209
    %284 = vmatprep.subr.mxu0 %v212
    %285 = vmatpush1.msra.mxu0 %v211
    %286 = vmatprep.subr.mxu0 %v214
    %287 = vmatpush1.msra.mxu0 %v213
    %288 = vmatprep.subr.mxu0 %v216
    %289 = vmatpush1.msra.mxu0 %v215
    %290 = vmatprep.subr.mxu0 %v218
    %291 = vmatpush1.msra.mxu0 %v217
    %292 = vmatprep.subr.mxu0 %v220
    %293 = vmatpush1.msra.mxu0 %v219
    %294 = vmatprep.subr.mxu0 %v222
    %295 = vmatpush1.msra.mxu0 %v221
    %296 = vmatprep.subr.mxu0 %v224
    %297 = vmatpush1.msra.mxu0 %v223
    %298 = vmatprep.subr.mxu0 %v226
    %299 = vmatpush1.msra.mxu0 %v225
    %300 = vmatprep.subr.mxu0 %v228
    %301 = vmatpush1.msra.mxu0 %v227
    %302 = vmatprep.subr.mxu0 %v230
    %303 = vmatpush1.msra.mxu0 %v229
    %304 = vmatprep.subr.mxu0 %v232
    %305 = vmatpush1.msra.mxu0 %v231
    %306 = vmatprep.subr.mxu0 %v234
    %307 = vmatpush1.msra.mxu0 %v233
    %308 = vmatprep.subr.mxu0 %v236
    %309 = vmatpush1.msra.mxu0 %v235
    %310 = vmatprep.subr.mxu0 %v238
    %311 = vmatpush1.msra.mxu0 %v237
    %312 = vmatprep.subr.mxu0 %v240
    %313 = vmatpush1.msra.mxu0 %v239
    %314 = vmatprep.subr.mxu0 %v242
    %315 = vmatpush1.msra.mxu0 %v241
    %316 = vmatprep.mubr.f32.mxu0 %v249
    %317 = vmatmul.mubr.f32.gmra.mrb[0].mxu0 %v248
    %v318 = vpop.f32.mrb[0].mxu0
    %v319 = vadd.f32 0.0, %v318
    %v320 = vpop.f32.mrb[0].mxu0
    %v321 = vadd.f32 0.0, %v320
    %322 = vdwg.mxu0
    %v327 = vsel %vm247, %v73, %v59
    %v328 = vsel %vm247, %v80, %v66
    %331 = vmatprep.subr.mxu0 %v115
    %332 = vmatpush1.msra.mxu0 %v114
    %333 = vmatprep.subr.mxu0 %v117
    %334 = vmatpush1.msra.mxu0 %v116
    %335 = vmatprep.subr.mxu0 %v119
    %336 = vmatpush1.msra.mxu0 %v118
    %337 = vmatprep.subr.mxu0 %v121
    %338 = vmatpush1.msra.mxu0 %v120
    %339 = vmatprep.subr.mxu0 %v123
    %340 = vmatpush1.msra.mxu0 %v122
    %341 = vmatprep.subr.mxu0 %v125
    %342 = vmatpush1.msra.mxu0 %v124
    %343 = vmatprep.subr.mxu0 %v127
    %344 = vmatpush1.msra.mxu0 %v126
    %345 = vmatprep.subr.mxu0 %v129
    %346 = vmatpush1.msra.mxu0 %v128
    %347 = vmatprep.subr.mxu0 %v131
    %348 = vmatpush1.msra.mxu0 %v130
    %349 = vmatprep.subr.mxu0 %v133
    %350 = vmatpush1.msra.mxu0 %v132
    %351 = vmatprep.subr.mxu0 %v135
    %352 = vmatpush1.msra.mxu0 %v134
    %353 = vmatprep.subr.mxu0 %v137
    %354 = vmatpush1.msra.mxu0 %v136
    %355 = vmatprep.subr.mxu0 %v139
    %356 = vmatpush1.msra.mxu0 %v138
    %357 = vmatprep.subr.mxu0 %v141
    %358 = vmatpush1.msra.mxu0 %v140
    %359 = vmatprep.subr.mxu0 %v143
    %360 = vmatpush1.msra.mxu0 %v142
    %361 = vmatprep.subr.mxu0 %v145
    %362 = vmatpush1.msra.mxu0 %v144
    %363 = vmatprep.subr.mxu0 %v147
    %364 = vmatpush1.msra.mxu0 %v146
    %365 = vmatprep.subr.mxu0 %v149
    %366 = vmatpush1.msra.mxu0 %v148
    %367 = vmatprep.subr.mxu0 %v151
    %368 = vmatpush1.msra.mxu0 %v150
    %369 = vmatprep.subr.mxu0 %v153
    %370 = vmatpush1.msra.mxu0 %v152
    %371 = vmatprep.subr.mxu0 %v155
    %372 = vmatpush1.msra.mxu0 %v154
    %373 = vmatprep.subr.mxu0 %v157
    %374 = vmatpush1.msra.mxu0 %v156
    %375 = vmatprep.subr.mxu0 %v159
    %376 = vmatpush1.msra.mxu0 %v158
    %377 = vmatprep.subr.mxu0 %v161
    %378 = vmatpush1.msra.mxu0 %v160
    %379 = vmatprep.subr.mxu0 %v163
    %380 = vmatpush1.msra.mxu0 %v162
    %381 = vmatprep.subr.mxu0 %v165
    %382 = vmatpush1.msra.mxu0 %v164
    %383 = vmatprep.subr.mxu0 %v167
    %384 = vmatpush1.msra.mxu0 %v166
    %385 = vmatprep.subr.mxu0 %v169
    %386 = vmatpush1.msra.mxu0 %v168
    %387 = vmatprep.subr.mxu0 %v171
    %388 = vmatpush1.msra.mxu0 %v170
    %389 = vmatprep.subr.mxu0 %v173
    %390 = vmatpush1.msra.mxu0 %v172
    %391 = vmatprep.subr.mxu0 %v175
    %392 = vmatpush1.msra.mxu0 %v174
    %393 = vmatprep.subr.mxu0 %v177
    %394 = vmatpush1.msra.mxu0 %v176
    %395 = vmatprep.mubr.f32.mxu0 %v328
    %396 = vmatmul.mubr.f32.gmra.mrb[0].mxu0 %v327
    %v397 = vpop.f32.mrb[0].mxu0
    %v398 = vadd.f32 %v319, %v397
    %v399 = vpop.f32.mrb[0].mxu0
    %v400 = vadd.f32 %v321, %v399
    %401 = vdwg.mxu0
    %s402 = sld [smem:[#allocation2]]
    %v403 = vstv %s402
    %v404 = vadd.f32 %v398, %v403
    %v405 = vadd.f32 %v400, %v403
    %v406 = vxor.u32 %v404, 2147483648
    %v407 = vxor.u32 %v405, 2147483648
    %v408 = vmul.f32 %v406, 1.442695
    %v409 = vpow.pop %v408
    %v410 = vmul.f32 %v407, 1.442695
    %v411 = vpow.pop %v410
    %v412 = vadd.f32 %v409, 1.0
    %v413 = vadd.f32 %v411, 1.0
    %v414 = vrcp.pop %v412
    %v415 = vmul.f32 1.0, %v414
    %v416 = vrcp.pop %v413
    %v417 = vmul.f32 1.0, %v416
    %v420 = vcombine.low %v415, %v417
    %v422 = vunpack.c.l.s4 1966171168
    %v423 = vunpack.c.0.s8 %v422
    %v424 = vlaneseq
    %v425 = vshrl.u32 %v424, 7
    %v426 = vsub.s32 %v423, %v425
    %v427 = vrot.slane %v420, %v426
    %v428 = vcombine.high %v427, %v427
    %v430 = vunpack.c.l.s4 1966171168
    %v431 = vunpack.c.0.s8 %v430
    %v432 = vlaneseq
    %v433 = vshrl.u32 %v432, 7
    %v434 = vsub.s32 %v431, %v433
    %v435 = vrot.slane %v427, %v434
    %v437 = vunpack.c.l.s4 1966171168
    %v438 = vunpack.c.0.s8 %v437
    %v439 = vlaneseq
    %v440 = vshrl.u32 %v439, 7
    %v441 = vsub.s32 %v438, %v440
    %v442 = vrot.slane %v428, %v441
    %v443 = vlaneseq
    %v444 = vshrl.u32 %v443, 7
    %v445 = vsub.s32 0, %v444
    %v446 = vrot.slane %v435, %v445
    %v447 = vlaneseq
    %v448 = vshrl.u32 %v447, 7
    %v449 = vsub.s32 1, %v448
    %v450 = vrot.slane %v435, %v449
    %v451 = vlaneseq
    %v452 = vshrl.u32 %v451, 7
    %v453 = vsub.s32 0, %v452
    %v454 = vrot.slane %v442, %v453
    %v455 = vlaneseq
    %v456 = vshrl.u32 %v455, 7
    %v457 = vsub.s32 1, %v456
    %v458 = vrot.slane %v442, %v457
    %v459 = vcombine.low %v446, %v450
    %v460 = vcombine.low %v454, %v458
    %v463 = vmul.f32 %v44, %v459
    %v464 = vmul.f32 %v45, %v460
    %465 = vst [vmem:[#allocation8] sm:$0xff] %v463
    %466 = vst [vmem:[#allocation8 + $0x8] sm:$0xff] %v464
    // Predicated region
    $region22: #{spatial_attention.1} parent=1 // pred_check
      _
    $region23: #{spatial_attention.1} parent=1 // pred_check_branch
      %468 = sbr.rel (0) target = $region25
    $region24: #{spatial_attention.1} parent=1 // pred_region
      %s470 = ssub.s32 256, 256
      %471 = vsyncadd [#allocation5], %s470
      %s472 = sshll.u32 [#allocation8], 4
      %s473 = int_to_ptr.vmem [resolvable:$true] %s472
      %478 = dma.vmem_to_hbm [thread:$0]  %s473, 256, %s3, [#allocation5], 128, 128, 8
    $region25: #{spatial_attention.1} parent=1 // pred_fallthru
      _
    // Predicated region
    $region26: #{spatial_attention.1} parent=1 // pred_check
      _
    $region27: #{spatial_attention.1} parent=1 // pred_check_branch
      %480 = sbr.rel (0) target = $region29
    $region28: #{spatial_attention.1} parent=1 // pred_region
      %481 = dma.done [#allocation5], 256
    $region29: #{spatial_attention.1} parent=1 // pred_fallthru
      _
    %482 = vsyncpa [#allocation4], 1
    %483 = vsyncpa [#allocation7], 1
    %484 = vsyncpa [#allocation5], 1

</llo_original>
